<compile_context>
chip_gen: v7x
topology: tpu7x:2x2x1
jax: 0.10.0
libtpu: 0.0.40
codegen_flags: <defaults>
</compile_context>

<pallas_src>
import jax
import jax.numpy as jnp
from jax import lax
from jax.experimental import pallas as pl
from jax.experimental.pallas import tpu as pltpu


def sa_block_kernel(xq_ref, xk_ref, wq_ref, bq_ref, wkv_ref, bkv_ref, gamma_ref,
                    o_ref, kv_sc, q_sc, m_sc, l_sc, acc_sc):
    # xq_ref : (1, C, TQ) f32   query-tile pixels (q conv + residual)
    # xk_ref : (1, C, TK) f32   key-tile pixels (only consumed while qi == 0)
    # wq_ref : (C, C)     bf16  query 1x1-conv weight
    # bq_ref : (C, 1)     f32
    # wkv_ref: (2C, C)    bf16  fused key/value 1x1-conv weights
    # bkv_ref: (2C, 1)    f32
    # gamma  : (1,)       f32   SMEM scalar
    # o_ref  : (1, C, TQ)
    # kv_sc  : (2C, N)    bf16  per-batch hoisted K/V (filled while qi == 0)
    # q_sc   : (C, TQ)    bf16  per-q-tile Q (filled at kj == 0)
    # m_sc, l_sc : (1, TQ) f32  online-softmax running max / sum
    # acc_sc : (C, TQ)    f32   un-normalized output accumulator
    C = wq_ref.shape[0]
    TK = xk_ref.shape[2]
    qi = pl.program_id(1)
    kj = pl.program_id(2)
    n_k = pl.num_programs(2)
    kcol = pl.multiple_of(kj * TK, TK)

    # K/V 1x1 conv: computed once per (batch, key-tile), bf16 MXU, f32 acc.
    @pl.when(qi == 0)
    def _():
        xk = xk_ref[0].astype(jnp.bfloat16)                        # (C, TK)
        kv = jnp.dot(wkv_ref[...], xk,
                     preferred_element_type=jnp.float32) + bkv_ref[...]
        kv_sc[:, pl.ds(kcol, TK)] = kv.astype(jnp.bfloat16)

    # Q 1x1 conv once per q-tile; reset the online-softmax state.
    @pl.when(kj == 0)
    def _():
        xq = xq_ref[0].astype(jnp.bfloat16)                        # (C, TQ)
        q = jnp.dot(wq_ref[...], xq,
                    preferred_element_type=jnp.float32) + bq_ref[...]
        q_sc[...] = q.astype(jnp.bfloat16)
        m_sc[...] = jnp.full_like(m_sc, -jnp.inf)
        l_sc[...] = jnp.zeros_like(l_sc)
        acc_sc[...] = jnp.zeros_like(acc_sc)

    k = kv_sc[pl.ds(0, C), pl.ds(kcol, TK)]                        # (C, TK) bf16
    v = kv_sc[pl.ds(C, C), pl.ds(kcol, TK)]                        # (C, TK) bf16

    # energy^T[j, i] = sum_c k[c, j] * q[c, i]  -> (TK, TQ).  Contracting dim 0
    # of both operands lets Mosaic fold the transpose into the MXU operand
    # push; keys-on-sublanes keeps the softmax and PV matmul transpose-free.
    energy = lax.dot_general(k, q_sc[...], (((0,), (0,)), ((), ())),
                             preferred_element_type=jnp.float32)   # (TK, TQ)

    # Online softmax over key tiles (stats in f32; exp on the EUP).
    m_prev = m_sc[...]                                             # (1, TQ)
    m_new = jnp.maximum(m_prev, jnp.max(energy, axis=0, keepdims=True))
    alpha = jnp.exp(m_prev - m_new)                                # (1, TQ)
    p = jnp.exp(energy - m_new)                                    # (TK, TQ) f32
    l_sc[...] = alpha * l_sc[...] + jnp.sum(p, axis=0, keepdims=True)
    m_sc[...] = m_new

    # acc[c, i] += sum_j v[c, j] * p[j, i]  (plain NN matmul, bf16/f32-acc).
    pv = jnp.dot(v, p.astype(jnp.bfloat16),
                 preferred_element_type=jnp.float32)               # (C, TQ)
    acc_sc[...] = alpha * acc_sc[...] + pv

    # Normalization + gamma + residual folded into the small (C, TQ) epilogue.
    @pl.when(kj == n_k - 1)
    def _():
        inv_l = pl.reciprocal(l_sc[...], approx=True)              # (1, TQ)
        x_res = xq_ref[0].astype(jnp.float32)                      # (C, TQ)
        o_ref[0] = (gamma_ref[0] * acc_sc[...] * inv_l + x_res).astype(o_ref.dtype)


def _pick_tile(n, candidates):
    for t in candidates:
        if n % t == 0:
            return t
    return n


def _pad_axis(a, axis, target):
    pad = target - a.shape[axis]
    if pad == 0:
        return a
    widths = [(0, 0)] * a.ndim
    widths[axis] = (0, pad)
    return jnp.pad(a, widths)


def sa_block_pallas(x_nchw, wq, bq, wk, bk, wv, bv, gamma, *, tq=None, tk=None):
    """x_nchw: (B, C, H, W) float32.  Returns (B, C, H, W)."""
    B, C, H, W = x_nchw.shape
    N = H * W
    if tq is None:
        tq = _pick_tile(N, (256, 128))
    if tk is None:
        tk = _pick_tile(N, (512, 256, 128))
    assert N % tq == 0 and N % tk == 0, (N, tq, tk)
    n_q = N // tq
    n_k = N // tk

    # Zero-pad channels to the bf16 sublane packing (16) -> unmasked vreg
    # loads/stores and a non-degenerate MXU contraction dim.
    CP = ((C + 15) // 16) * 16

    # NCHW -> (B, C, N): pure reshape (matches torch .view); no HBM transpose.
    x_bcn = _pad_axis(x_nchw.reshape(B, C, N), 1, CP)

    def pad_w(w):
        return _pad_axis(_pad_axis(w, 0, CP), 1, CP)

    wq_p = pad_w(wq).astype(jnp.bfloat16)                                 # (CP, CP)
    w_kv = jnp.concatenate([pad_w(wk), pad_w(wv)], axis=0).astype(jnp.bfloat16)
    bq_p = _pad_axis(bq, 0, CP).reshape(CP, 1).astype(jnp.float32)
    b_kv = jnp.concatenate([_pad_axis(bk, 0, CP), _pad_axis(bv, 0, CP)],
                           axis=0).reshape(2 * CP, 1).astype(jnp.float32)
    gamma1 = gamma.reshape(1).astype(jnp.float32)

    # x is streamed twice: a q-tile view (resident across kj) and a k-tile
    # view whose index only advances while qi == 0 (afterwards K/V come from
    # the hoisted scratch), keeping HBM read traffic O(C*N) per batch.
    xk_index = lambda b, qi, kj: (b, 0, jnp.where(qi == 0, kj, n_k - 1))

    vmem_est = (
        4 * CP * tq * 4            # x_q + out blocks (double-buffered)
        + 2 * CP * tk * 4          # x_k blocks
        + 2 * CP * N * 2           # hoisted bf16 K/V scratch
        + CP * tq * (2 + 4)        # q scratch + f32 accumulator
        + 3 * tk * tq * 4          # energy / p temporaries
        + 6 * CP * CP              # weights
    )
    vmem_limit = int(min(max(2 * vmem_est, 32 * 1024 * 1024), 64 * 1024 * 1024))

    cost = pl.CostEstimate(
        flops=int(B * (4 * CP * N * N + 6 * CP * CP * N)),
        transcendentals=int(B * N * N),
        bytes_accessed=int(4 * B * CP * N * 4),
    )

    out_bcn = pl.pallas_call(
        sa_block_kernel,
        out_shape=jax.ShapeDtypeStruct((B, CP, N), x_nchw.dtype),
        grid_spec=pltpu.PrefetchScalarGridSpec(
            num_scalar_prefetch=0,
            grid=(B, n_q, n_k),
            in_specs=[
                pl.BlockSpec((1, CP, tq), lambda b, qi, kj: (b, 0, qi)),   # x (q tile)
                pl.BlockSpec((1, CP, tk), xk_index),                       # x (k tile)
                pl.BlockSpec((CP, CP), lambda b, qi, kj: (0, 0)),          # Wq
                pl.BlockSpec((CP, 1), lambda b, qi, kj: (0, 0)),           # bq
                pl.BlockSpec((2 * CP, CP), lambda b, qi, kj: (0, 0)),      # W_kv
                pl.BlockSpec((2 * CP, 1), lambda b, qi, kj: (0, 0)),       # b_kv
                pl.BlockSpec(memory_space=pltpu.MemorySpace.SMEM),         # gamma
            ],
            out_specs=pl.BlockSpec((1, CP, tq), lambda b, qi, kj: (b, 0, qi)),
            scratch_shapes=[
                pltpu.VMEM((2 * CP, N), jnp.bfloat16),   # hoisted K/V
                pltpu.VMEM((CP, tq), jnp.bfloat16),      # Q tile
                pltpu.VMEM((1, tq), jnp.float32),        # running max
                pltpu.VMEM((1, tq), jnp.float32),        # running sum
                pltpu.VMEM((CP, tq), jnp.float32),       # output accumulator
            ],
        ),
        compiler_params=pltpu.CompilerParams(
            dimension_semantics=("parallel", "arbitrary", "arbitrary"),
            vmem_limit_bytes=vmem_limit),
        cost_estimate=cost,
    )(x_bcn, x_bcn, wq_p, bq_p, w_kv, b_kv, gamma1)

    return out_bcn[:, :C, :].reshape(B, C, H, W)


def sa_block_reference(x_nchw, wq, bq, wk, bk, wv, bv, gamma):
    """Pure-JAX f32 reference mirroring the PyTorch forward."""
    B, C, H, W = x_nchw.shape
    N = H * W

    def conv1x1(x, w, b):  # x: (B, C, H, W), w: (C, C), b: (C,)
        return jnp.einsum('oc,bchw->bohw', w, x) + b[None, :, None, None]

    q = conv1x1(x_nchw, wq, bq).reshape(B, C, N).transpose(0, 2, 1)  # (B, N, C)
    k = conv1x1(x_nchw, wk, bk).reshape(B, C, N)                     # (B, C, N)
    v = conv1x1(x_nchw, wv, bv).reshape(B, C, N)                     # (B, C, N)
    energy = jnp.einsum('bnc,bcm->bnm', q, k)                        # (B, N, N)
    attn = jax.nn.softmax(energy, axis=-1)
    out = jnp.einsum('bcn,bmn->bcm', v, attn)                        # (B, C, N)
    out = out.reshape(B, C, H, W)
    return gamma[0] * out + x_nchw


if __name__ == "__main__":
    B, C, H, W = 2, 4, 16, 16

    key = jax.random.PRNGKey(0)
    kx, kq, kk, kv, kbq, kbk, kbv = jax.random.split(key, 7)

    x = jax.random.normal(kx, (B, C, H, W), dtype=jnp.float32)

    # conv weights (out_c, in_c) for 1x1 convs; biases (C,)
    scale = 1.0 / jnp.sqrt(jnp.float32(C))
    wq = jax.random.normal(kq, (C, C), dtype=jnp.float32) * scale
    wk = jax.random.normal(kk, (C, C), dtype=jnp.float32) * scale
    wv = jax.random.normal(kv, (C, C), dtype=jnp.float32) * scale
    bq = jax.random.normal(kbq, (C,), dtype=jnp.float32) * 0.1
    bk = jax.random.normal(kbk, (C,), dtype=jnp.float32) * 0.1
    bv = jax.random.normal(kbv, (C,), dtype=jnp.float32) * 0.1
    gamma = jnp.ones((1,), dtype=jnp.float32)  # nn.Parameter(torch.ones(1))

    # tq=tk=128 at N=256 exercises both the K/V-scratch reuse path (qi > 0)
    # and the multi-step online softmax (n_k > 1).
    out = sa_block_pallas(x, wq, bq, wk, bk, wv, bv, gamma, tq=128, tk=128)
    out = jax.block_until_ready(out)

    ref = sa_block_reference(x, wq, bq, wk, bk, wv, bv, gamma)
    assert out.shape == (B, C, H, W)
    # bf16 MXU matmuls (f32 accumulation) + approx reciprocal -> ~1e-2 abs error
    # vs the pure-f32 reference.
    assert jnp.allclose(out, ref, atol=5e-2, rtol=5e-2), "mismatch vs reference"

    print("KERNEL_OK")
</pallas_src>

<mosaic_0001>
module attributes {stable_mosaic.version = 11 : i64} {
  func.func @sa_block_kernel(%arg0: i32, %arg1: i32, %arg2: i32, %arg3: memref<1x16x128xf32, #tpu.memory_space<vmem>>, %arg4: memref<1x16x128xf32, #tpu.memory_space<vmem>>, %arg5: memref<16x16xbf16, #tpu.memory_space<vmem>>, %arg6: memref<16x1xf32, #tpu.memory_space<vmem>>, %arg7: memref<32x16xbf16, #tpu.memory_space<vmem>>, %arg8: memref<32x1xf32, #tpu.memory_space<vmem>>, %arg9: memref<1xf32, #tpu.memory_space<smem>>, %arg10: memref<1x16x128xf32, #tpu.memory_space<vmem>>, %arg11: memref<32x256xbf16, #tpu.memory_space<vmem>>, %arg12: memref<16x128xbf16, #tpu.memory_space<vmem>>, %arg13: memref<1x128xf32, #tpu.memory_space<vmem>>, %arg14: memref<1x128xf32, #tpu.memory_space<vmem>>, %arg15: memref<16x128xf32, #tpu.memory_space<vmem>>) attributes {dimension_semantics = [#tpu.dimension_semantics<parallel>, #tpu.dimension_semantics<arbitrary>, #tpu.dimension_semantics<arbitrary>], iteration_bounds = array<i64: 2, 2, 2>, scalar_prefetch = 0 : i64, scratch_operands = 5 : i64, tpu.core_type = #tpu.core_type<tc>, window_params = [{transform_indices = @transform_0, window_bounds = array<i64: 1, 16, 128>}, {transform_indices = @transform_1, window_bounds = array<i64: 1, 16, 128>}, {pipeline_mode = #tpu.pipeline_mode<synchronous>, transform_indices = @transform_2, window_bounds = array<i64: 16, 16>}, {pipeline_mode = #tpu.pipeline_mode<synchronous>, transform_indices = @transform_3, window_bounds = array<i64: 16, 1>}, {pipeline_mode = #tpu.pipeline_mode<synchronous>, transform_indices = @transform_4, window_bounds = array<i64: 32, 16>}, {pipeline_mode = #tpu.pipeline_mode<synchronous>, transform_indices = @transform_5, window_bounds = array<i64: 32, 1>}, {transform_indices = @transform_6, window_bounds = array<i64: 1>}, {transform_indices = @transform_7, window_bounds = array<i64: 1, 16, 128>}]} {
    %c128_i32 = arith.constant 128 : i32
    %0 = arith.muli %arg2, %c128_i32 : i32
    %1 = tpu.assume_multiple %0, 128 : i32
    %c0_i32 = arith.constant 0 : i32
    %2 = arith.cmpi eq, %arg1, %c0_i32 : i32
    %3 = arith.extui %2 : i1 to i32
    %c0_i32_0 = arith.constant 0 : i32
    %4 = arith.cmpi ne, %3, %c0_i32_0 : i32
    scf.if %4 {
      %c0_21 = arith.constant 0 : index
      %c0_22 = arith.constant 0 : index
      %c0_23 = arith.constant 0 : index
      %40 = vector.load %arg4[%c0_21, %c0_22, %c0_23] : memref<1x16x128xf32, #tpu.memory_space<vmem>>, vector<1x16x128xf32>
      %41 = vector.shape_cast %40 : vector<1x16x128xf32> to vector<16x128xf32>
      %42 = arith.truncf %41 : vector<16x128xf32> to vector<16x128xbf16>
      %c0_24 = arith.constant 0 : index
      %c0_25 = arith.constant 0 : index
      %43 = vector.load %arg7[%c0_24, %c0_25] : memref<32x16xbf16, #tpu.memory_space<vmem>>, vector<32x16xbf16>
      %cst_26 = arith.constant dense<0.000000e+00> : vector<32x128xf32>
      %44 = tpu.matmul %43, %42, %cst_26 {dimension_numbers = #tpu.dot_dimension_numbers<[1], [0], [0], [1], [0, 0, 1, 1], [], []>} : vector<32x16xbf16>, vector<16x128xbf16>, vector<32x128xf32> -> vector<32x128xf32>
      %c0_27 = arith.constant 0 : index
      %c0_28 = arith.constant 0 : index
      %45 = vector.load %arg8[%c0_27, %c0_28] : memref<32x1xf32, #tpu.memory_space<vmem>>, vector<32x1xf32>
      %46 = vector.broadcast %45 : vector<32x1xf32> to vector<32x128xf32>
      %47 = arith.addf %44, %46 : vector<32x128xf32>
      %48 = arith.truncf %47 : vector<32x128xf32> to vector<32x128xbf16>
      %c0_29 = arith.constant 0 : index
      %49 = arith.index_cast %1 : i32 to index
      %50 = vector.load %arg11[%c0_29, %49] : memref<32x256xbf16, #tpu.memory_space<vmem>>, vector<32x128xbf16>
      tpu.vector_store %arg11[%c0_29, %49], %48 {strides = array<i32>} : memref<32x256xbf16, #tpu.memory_space<vmem>>, vector<32x128xbf16>,
    } else {
    }
    %c0_i32_1 = arith.constant 0 : i32
    %5 = arith.cmpi eq, %arg2, %c0_i32_1 : i32
    %6 = arith.extui %5 : i1 to i32
    %c0_i32_2 = arith.constant 0 : i32
    %7 = arith.cmpi ne, %6, %c0_i32_2 : i32
    scf.if %7 {
      %c0_21 = arith.constant 0 : index
      %c0_22 = arith.constant 0 : index
      %c0_23 = arith.constant 0 : index
      %40 = vector.load %arg3[%c0_21, %c0_22, %c0_23] : memref<1x16x128xf32, #tpu.memory_space<vmem>>, vector<1x16x128xf32>
      %41 = vector.shape_cast %40 : vector<1x16x128xf32> to vector<16x128xf32>
      %42 = arith.truncf %41 : vector<16x128xf32> to vector<16x128xbf16>
      %c0_24 = arith.constant 0 : index
      %c0_25 = arith.constant 0 : index
      %43 = vector.load %arg5[%c0_24, %c0_25] : memref<16x16xbf16, #tpu.memory_space<vmem>>, vector<16x16xbf16>
      %cst_26 = arith.constant dense<0.000000e+00> : vector<16x128xf32>
      %44 = tpu.matmul %43, %42, %cst_26 {dimension_numbers = #tpu.dot_dimension_numbers<[1], [0], [0], [1], [0, 0, 1, 1], [], []>} : vector<16x16xbf16>, vector<16x128xbf16>, vector<16x128xf32> -> vector<16x128xf32>
      %c0_27 = arith.constant 0 : index
      %c0_28 = arith.constant 0 : index
      %45 = vector.load %arg6[%c0_27, %c0_28] : memref<16x1xf32, #tpu.memory_space<vmem>>, vector<16x1xf32>
      %46 = vector.broadcast %45 : vector<16x1xf32> to vector<16x128xf32>
      %47 = arith.addf %44, %46 : vector<16x128xf32>
      %48 = arith.truncf %47 : vector<16x128xf32> to vector<16x128xbf16>
      %c0_29 = arith.constant 0 : index
      %c0_30 = arith.constant 0 : index
      %49 = vector.load %arg12[%c0_29, %c0_30] : memref<16x128xbf16, #tpu.memory_space<vmem>>, vector<16x128xbf16>
      tpu.vector_store %arg12[%c0_29, %c0_30], %48 {strides = array<i32>} : memref<16x128xbf16, #tpu.memory_space<vmem>>, vector<16x128xbf16>,
      %cst_31 = arith.constant 0xFF800000 : f32
      %50 = vector.broadcast %cst_31 : f32 to vector<1x128xf32>
      %c0_32 = arith.constant 0 : index
      %c0_33 = arith.constant 0 : index
      %51 = vector.load %arg13[%c0_32, %c0_33] : memref<1x128xf32, #tpu.memory_space<vmem>>, vector<1x128xf32>
      tpu.vector_store %arg13[%c0_32, %c0_33], %50 {strides = array<i32>} : memref<1x128xf32, #tpu.memory_space<vmem>>, vector<1x128xf32>,
      %cst_34 = arith.constant 0.000000e+00 : f32
      %52 = vector.broadcast %cst_34 : f32 to vector<1x128xf32>
      %c0_35 = arith.constant 0 : index
      %c0_36 = arith.constant 0 : index
      %53 = vector.load %arg14[%c0_35, %c0_36] : memref<1x128xf32, #tpu.memory_space<vmem>>, vector<1x128xf32>
      tpu.vector_store %arg14[%c0_35, %c0_36], %52 {strides = array<i32>} : memref<1x128xf32, #tpu.memory_space<vmem>>, vector<1x128xf32>,
      %cst_37 = arith.constant 0.000000e+00 : f32
      %54 = vector.broadcast %cst_37 : f32 to vector<16x128xf32>
      %c0_38 = arith.constant 0 : index
      %c0_39 = arith.constant 0 : index
      %55 = vector.load %arg15[%c0_38, %c0_39] : memref<16x128xf32, #tpu.memory_space<vmem>>, vector<16x128xf32>
      tpu.vector_store %arg15[%c0_38, %c0_39], %54 {strides = array<i32>} : memref<16x128xf32, #tpu.memory_space<vmem>>, vector<16x128xf32>,
    } else {
    }
    %c0 = arith.constant 0 : index
    %8 = arith.index_cast %1 : i32 to index
    %9 = vector.load %arg11[%c0, %8] : memref<32x256xbf16, #tpu.memory_space<vmem>>, vector<16x128xbf16>
    %c16 = arith.constant 16 : index
    %10 = arith.index_cast %1 : i32 to index
    %11 = vector.load %arg11[%c16, %10] : memref<32x256xbf16, #tpu.memory_space<vmem>>, vector<16x128xbf16>
    %c0_3 = arith.constant 0 : index
    %c0_4 = arith.constant 0 : index
    %12 = vector.load %arg12[%c0_3, %c0_4] : memref<16x128xbf16, #tpu.memory_space<vmem>>, vector<16x128xbf16>
    %cst = arith.constant dense<0.000000e+00> : vector<128x128xf32>
    %13 = tpu.matmul %9, %12, %cst {dimension_numbers = #tpu.dot_dimension_numbers<[0], [0], [1], [1], [0, 1, 1, 1], [], []>} : vector<16x128xbf16>, vector<16x128xbf16>, vector<128x128xf32> -> vector<128x128xf32>
    %c0_5 = arith.constant 0 : index
    %c0_6 = arith.constant 0 : index
    %14 = vector.load %arg13[%c0_5, %c0_6] : memref<1x128xf32, #tpu.memory_space<vmem>>, vector<1x128xf32>
    %cst_7 = arith.constant dense<0xFF800000> : vector<128xf32>
    %15 = vector.multi_reduction <maximumf>, %13, %cst_7 [0] : vector<128x128xf32> to vector<128xf32>
    %16 = vector.shape_cast %15 : vector<128xf32> to vector<1x128xf32>
    %17 = arith.maximumf %14, %16 : vector<1x128xf32>
    %18 = arith.subf %14, %17 : vector<1x128xf32>
    %19 = math.exp %18 : vector<1x128xf32>
    %20 = vector.broadcast %17 : vector<1x128xf32> to vector<128x128xf32>
    %21 = arith.subf %13, %20 : vector<128x128xf32>
    %22 = math.exp %21 : vector<128x128xf32>
    %c0_8 = arith.constant 0 : index
    %c0_9 = arith.constant 0 : index
    %23 = vector.load %arg14[%c0_8, %c0_9] : memref<1x128xf32, #tpu.memory_space<vmem>>, vector<1x128xf32>
    %24 = arith.mulf %19, %23 : vector<1x128xf32>
    %cst_10 = arith.constant dense<0.000000e+00> : vector<128xf32>
    %25 = vector.multi_reduction <add>, %22, %cst_10 [0] : vector<128x128xf32> to vector<128xf32>
    %26 = vector.shape_cast %25 : vector<128xf32> to vector<1x128xf32>
    %27 = arith.addf %24, %26 : vector<1x128xf32>
    %c0_11 = arith.constant 0 : index
    %c0_12 = arith.constant 0 : index
    %28 = vector.load %arg14[%c0_11, %c0_12] : memref<1x128xf32, #tpu.memory_space<vmem>>, vector<1x128xf32>
    tpu.vector_store %arg14[%c0_11, %c0_12], %27 {strides = array<i32>} : memref<1x128xf32, #tpu.memory_space<vmem>>, vector<1x128xf32>,
    %c0_13 = arith.constant 0 : index
    %c0_14 = arith.constant 0 : index
    %29 = vector.load %arg13[%c0_13, %c0_14] : memref<1x128xf32, #tpu.memory_space<vmem>>, vector<1x128xf32>
    tpu.vector_store %arg13[%c0_13, %c0_14], %17 {strides = array<i32>} : memref<1x128xf32, #tpu.memory_space<vmem>>, vector<1x128xf32>,
    %30 = arith.truncf %22 : vector<128x128xf32> to vector<128x128xbf16>
    %cst_15 = arith.constant dense<0.000000e+00> : vector<16x128xf32>
    %31 = tpu.matmul %11, %30, %cst_15 {dimension_numbers = #tpu.dot_dimension_numbers<[1], [0], [0], [1], [0, 0, 1, 1], [], []>} : vector<16x128xbf16>, vector<128x128xbf16>, vector<16x128xf32> -> vector<16x128xf32>
    %c0_16 = arith.constant 0 : index
    %c0_17 = arith.constant 0 : index
    %32 = vector.load %arg15[%c0_16, %c0_17] : memref<16x128xf32, #tpu.memory_space<vmem>>, vector<16x128xf32>
    %33 = vector.broadcast %19 : vector<1x128xf32> to vector<16x128xf32>
    %34 = arith.mulf %33, %32 : vector<16x128xf32>
    %35 = arith.addf %34, %31 : vector<16x128xf32>
    %c0_18 = arith.constant 0 : index
    %c0_19 = arith.constant 0 : index
    %36 = vector.load %arg15[%c0_18, %c0_19] : memref<16x128xf32, #tpu.memory_space<vmem>>, vector<16x128xf32>
    tpu.vector_store %arg15[%c0_18, %c0_19], %35 {strides = array<i32>} : memref<16x128xf32, #tpu.memory_space<vmem>>, vector<16x128xf32>,
    %c1_i32 = arith.constant 1 : i32
    %37 = arith.cmpi eq, %arg2, %c1_i32 : i32
    %38 = arith.extui %37 : i1 to i32
    %c0_i32_20 = arith.constant 0 : i32
    %39 = arith.cmpi ne, %38, %c0_i32_20 : i32
    scf.if %39 {
      %c0_21 = arith.constant 0 : index
      %c0_22 = arith.constant 0 : index
      %40 = vector.load %arg14[%c0_21, %c0_22] : memref<1x128xf32, #tpu.memory_space<vmem>>, vector<1x128xf32>
      %41 = tpu.reciprocal %40 {approx = true} : vector<1x128xf32> -> vector<1x128xf32>
      %c0_23 = arith.constant 0 : index
      %c0_24 = arith.constant 0 : index
      %c0_25 = arith.constant 0 : index
      %42 = vector.load %arg3[%c0_23, %c0_24, %c0_25] : memref<1x16x128xf32, #tpu.memory_space<vmem>>, vector<1x16x128xf32>
      %43 = vector.shape_cast %42 : vector<1x16x128xf32> to vector<16x128xf32>
      %c0_26 = arith.constant 0 : index
      %44 = memref.load %arg9[%c0_26] : memref<1xf32, #tpu.memory_space<smem>>
      %c0_27 = arith.constant 0 : index
      %c0_28 = arith.constant 0 : index
      %45 = vector.load %arg15[%c0_27, %c0_28] : memref<16x128xf32, #tpu.memory_space<vmem>>, vector<16x128xf32>
      %46 = vector.broadcast %44 : f32 to vector<16x128xf32>
      %47 = arith.mulf %46, %45 : vector<16x128xf32>
      %48 = vector.broadcast %41 : vector<1x128xf32> to vector<16x128xf32>
      %49 = arith.mulf %47, %48 : vector<16x128xf32>
      %50 = arith.addf %49, %43 : vector<16x128xf32>
      %c0_29 = arith.constant 0 : index
      %c0_30 = arith.constant 0 : index
      %c0_31 = arith.constant 0 : index
      %51 = vector.load %arg10[%c0_29, %c0_30, %c0_31] : memref<1x16x128xf32, #tpu.memory_space<vmem>>, vector<1x16x128xf32>
      %52 = vector.shape_cast %51 : vector<1x16x128xf32> to vector<16x128xf32>
      %53 = vector.shape_cast %50 : vector<16x128xf32> to vector<1x16x128xf32>
      tpu.vector_store %arg10[%c0_29, %c0_30, %c0_31], %53 {strides = array<i32>} : memref<1x16x128xf32, #tpu.memory_space<vmem>>, vector<1x16x128xf32>,
    } else {
    }
    return
  }
  func.func @transform_0(%arg0: i32, %arg1: i32, %arg2: i32) -> (i32, i32, i32) {
    %c0_i32 = arith.constant 0 : i32
    %c0_i32_0 = arith.constant 0 : i32
    return %arg0, %c0_i32, %arg1 : i32, i32, i32
  }
  func.func @transform_1(%arg0: i32, %arg1: i32, %arg2: i32) -> (i32, i32, i32) {
    %c0_i32 = arith.constant 0 : i32
    %0 = arith.cmpi eq, %arg1, %c0_i32 : i32
    %c1_i32 = arith.constant 1 : i32
    %1 = arith.select %0, %arg2, %c1_i32 : i32
    %c0_i32_0 = arith.constant 0 : i32
    %c0_i32_1 = arith.constant 0 : i32
    return %arg0, %c0_i32_0, %1 : i32, i32, i32
  }
  func.func @transform_2(%arg0: i32, %arg1: i32, %arg2: i32) -> (i32, i32) {
    %c0_i32 = arith.constant 0 : i32
    %c0_i32_0 = arith.constant 0 : i32
    %c0_i32_1 = arith.constant 0 : i32
    return %c0_i32, %c0_i32_0 : i32, i32
  }
  func.func @transform_3(%arg0: i32, %arg1: i32, %arg2: i32) -> (i32, i32) {
    %c0_i32 = arith.constant 0 : i32
    %c0_i32_0 = arith.constant 0 : i32
    %c0_i32_1 = arith.constant 0 : i32
    return %c0_i32, %c0_i32_0 : i32, i32
  }
  func.func @transform_4(%arg0: i32, %arg1: i32, %arg2: i32) -> (i32, i32) {
    %c0_i32 = arith.constant 0 : i32
    %c0_i32_0 = arith.constant 0 : i32
    %c0_i32_1 = arith.constant 0 : i32
    return %c0_i32, %c0_i32_0 : i32, i32
  }
  func.func @transform_5(%arg0: i32, %arg1: i32, %arg2: i32) -> (i32, i32) {
    %c0_i32 = arith.constant 0 : i32
    %c0_i32_0 = arith.constant 0 : i32
    %c0_i32_1 = arith.constant 0 : i32
    return %c0_i32, %c0_i32_0 : i32, i32
  }
  func.func @transform_6(%arg0: i32, %arg1: i32, %arg2: i32) -> i32 {
    %c0_i32 = arith.constant 0 : i32
    %c0_i32_0 = arith.constant 0 : i32
    return %c0_i32 : i32
  }
  func.func @transform_7(%arg0: i32, %arg1: i32, %arg2: i32) -> (i32, i32, i32) {
    %c0_i32 = arith.constant 0 : i32
    %c0_i32_0 = arith.constant 0 : i32
    return %arg0, %c0_i32, %arg1 : i32, i32, i32
  }
}

</mosaic_0001>

<llo_original>
// kernel: tpu_custom_call.1
$region0: #{tpu_custom_call.1}
  #allocation0 [shape = 'u32[]', space=smem, size = 0x4, offset = 0x4, fixed_abs, tag = 'smem constant byte address 0x4 - core index']
  #allocation1 [shape = 'u32[144,128]{1,0:T(1,128)}', space=vmem, size = 0x12000, scoped, tag = 'internal scratch']
  #allocation2 [shape = 'bf16[32,256]{1,0:T(16,128)(2,1)}', space=vmem, size = 0x4000, scoped, tag = 'scratch operand']
  #allocation3 [shape = 'bf16[16,128]{1,0:T(16,128)(2,1)}', space=vmem, size = 0x1000, scoped, tag = 'scratch operand']
  #allocation4 [shape = 'f32[1,128]{1,0:T(1,128)}', space=vmem, size = 0x200, scoped, tag = 'scratch operand']
  #allocation5 [shape = 'f32[1,128]{1,0:T(1,128)}', space=vmem, size = 0x200, scoped, tag = 'scratch operand']
  #allocation6 [shape = 'f32[16,128]{1,0:T(8,128)}', space=vmem, size = 0x2000, scoped, tag = 'scratch operand']
  #allocation7 [shape = 'f32[1]{0:T(128)S(6)}', space=smem, size = 0x200, scoped, tag = 'scoped memory for tpu_custom_call.1']
  %s0 = inlined_call_operand.hbm [shape: f32[2,16,256], index: 0, kind: input, shape index: {}]
  %s1 = inlined_call_operand.hbm [shape: f32[2,16,256], index: 1, kind: input, shape index: {}]
  %s2 = inlined_call_operand.vmem [shape: bf16[16,16], index: 2, kind: input, shape index: {}]
  %s3 = inlined_call_operand.vmem [shape: f32[16,1], index: 3, kind: input, shape index: {}]
  %s4 = inlined_call_operand.vmem [shape: bf16[32,16], index: 4, kind: input, shape index: {}]
  %s5 = inlined_call_operand.vmem [shape: f32[32,1], index: 5, kind: input, shape index: {}]
  %s6 = inlined_call_operand.<no memory space> [shape: f32[1], index: 6, kind: input, shape index: {}]
  %s7 = inlined_call_operand.hbm [shape: f32[2,16,256], index: 7, kind: output, shape index: {}]
  %s8 = sld [smem:[#allocation0]]
  $region81: #{tpu_custom_call.1} parent=0
    _
  %s10 = ssub.s32 1, %s8
  %s11 = scalar_select 0, %s10, %s8
  %12 = sst [smem:[#allocation7]] %s6
  $region1: #{tpu_custom_call.1} parent=0
    #allocation8 [shape = 'u8[16384]{0}', space=vmem, size = 0x4000, scoped, tag = 'input window, operand 0']
    #allocation9 [shape = 's32[2]{0}', space=sflag, size = 0x8, scoped, tag = 'scoped memory for tpu_custom_call.1']
    #allocation10 [shape = 's32[2]{0}', space=sflag, size = 0x8, scoped, tag = 'scoped memory for tpu_custom_call.1']
    #allocation11 [shape = 'u8[16384]{0}', space=vmem, size = 0x4000, scoped, tag = 'input window, operand 1']
    #allocation12 [shape = 's32[2]{0}', space=sflag, size = 0x8, scoped, tag = 'scoped memory for tpu_custom_call.1']
    #allocation13 [shape = 'u8[16384]{0}', space=vmem, size = 0x4000, scoped, tag = 'output window, operand 0']
    %13 = vsyncpa [#allocation9], 0
    %s14 = scalar_lea.sflag [#allocation9], 1
    %15 = vsyncpa %s14, 0
    %16 = vsyncpa [#allocation12], 0
    %s17 = scalar_lea.sflag [#allocation12], 1
    %18 = vsyncpa %s17, 0
    %19 = vsyncpa [#allocation10], 0
    %s20 = scalar_lea.sflag [#allocation10], 1
    %21 = vsyncpa %s20, 0
    loop: start=0, step=1, limit=10
    $region2: #{tpu_custom_call.1} parent=1 // loop_pre_header
      _
    $region3: #{tpu_custom_call.1} parent=1 // loop_header
      %s23 = sphi 0, %s27
      %p24 = scmp.ge.s32.totalorder %s23, 10
      %s30 = sphi 0, %s49
      %s31 = sphi 0, %s45
      %s32 = sphi 0, %s41
      %s33 = sphi 0, %s30
      %s34 = sphi 0, %s31
      %s35 = sphi 0, %s32
      %s36 = sphi 0, %s33
      %s37 = sphi 0, %s34
      %s38 = sphi 0, %s35
      %s54 = sphi 0, %s56
      %s57 = sphi 0, %s54
      %s58 = sphi 0, %s57
      %s74 = sphi 0, %s58
      %s86 = sphi 0, %s88
      %s89 = sphi 0, %s86
      %s90 = sphi 0, %s89
      %s106 = sphi 0, %s90
      %s110 = sphi 0, %s110
      %s112 = sphi 0, %s110
      %s113 = sphi 0, %s112
      %s127 = sphi 0, %s113
      %s131 = sphi 0, %s131
      %s133 = sphi 0, %s131
      %s134 = sphi 0, %s133
      %s148 = sphi 0, %s134
      %s152 = sphi 0, %s152
      %s154 = sphi 0, %s152
      %s155 = sphi 0, %s154
      %s169 = sphi 0, %s155
      %s173 = sphi 0, %s173
      %s175 = sphi 0, %s173
      %s176 = sphi 0, %s175
      %s190 = sphi 0, %s176
      %s194 = sphi 0, %s194
      %s196 = sphi 0, %s194
      %s197 = sphi 0, %s196
      %s211 = sphi 0, %s197
      %s219 = sphi 0, %s221
      %s222 = sphi 0, %s219
      %s223 = sphi 0, %s222
      %s239 = sphi 0, %s223
    $region4: #{tpu_custom_call.1} parent=1 // loop_header_branch
      %26 = sbr.rel (%p24) target = $region8
    $region5: #{tpu_custom_call.1} parent=1 // loop_body
      %s28 = ssub.s32 %s23, 1
      %s29 = ssub.s32 %s23, 2
      %s39 = sadd.s32 1, %s32
      %p40 = scmp.ge.s32.totalorder %s39, 2
      %s41 = scalar_select %p40, 0, %s39
      %s42 = sadd.s32 1, %s31
      %s43 = scalar_select %p40, %s42, %s31
      %p44 = scmp.ge.s32.totalorder %s43, 2
      %s45 = scalar_select %p44, 0, %s43
      %s46 = sadd.s32 1, %s30
      %s47 = scalar_select %p44, %s46, %s30
      %p48 = scmp.ge.s32.totalorder %s47, 2
      %s49 = scalar_select %p48, 0, %s47
      %s50 = ssub.s32 %s30, %s49
      %s51 = ssub.s32 %s31, %s45
      %s52 = sor.u32 %s50, %s51
      %p53 = scmp.eq.s32.totalorder %s52, 0
      %s55 = sadd.s32 %s54, 1
      %s56 = scalar_select %p53, %s54, %s55
      %p59 = pneg %p53
      %p60 = scmp.eq.s32.totalorder %s23, 7
      %p61 = por %p59, %p60
      %p62 = scmp.ne.s32.totalorder %s54, %s57
      %p63 = scmp.eq.s32.totalorder %s23, 0
      %p64 = por %p62, %p63
      %p65 = scmp.ne.s32.totalorder %s54, %s57
      %p66 = scmp.eq.s32.totalorder %s28, 7
      %p67 = por %p65, %p66
      %p68 = scmp.ne.s32.totalorder %s57, %s58
      %p69 = scmp.eq.s32.totalorder %s28, 0
      %p70 = por %p68, %p69
      %p71 = scmp.ne.s32.totalorder %s57, %s58
      %p72 = scmp.eq.s32.totalorder %s29, 7
      %p73 = por %p71, %p72
      %p75 = scmp.ne.s32.totalorder %s58, %s74
      %p76 = scmp.eq.s32.totalorder %s29, 0
      %p77 = por %p75, %p76
      %p78 = scmp.eq.s32.totalorder %s31, 0
      %s79 = scalar_select %p78, %s32, 1
      %p80 = scmp.eq.s32.totalorder %s45, 0
      %s81 = scalar_select %p80, %s41, 1
      %s82 = ssub.s32 %s30, %s49
      %s83 = ssub.s32 %s79, %s81
      %s84 = sor.u32 %s82, %s83
      %p85 = scmp.eq.s32.totalorder %s84, 0
      %s87 = sadd.s32 %s86, 1
      %s88 = scalar_select %p85, %s86, %s87
      %p91 = pneg %p85
      %p92 = scmp.eq.s32.totalorder %s23, 7
      %p93 = por %p91, %p92
      %p94 = scmp.ne.s32.totalorder %s86, %s89
      %p95 = scmp.eq.s32.totalorder %s23, 0
      %p96 = por %p94, %p95
      %p97 = scmp.ne.s32.totalorder %s86, %s89
      %p98 = scmp.eq.s32.totalorder %s28, 7
      %p99 = por %p97, %p98
      %p100 = scmp.ne.s32.totalorder %s89, %s90
      %p101 = scmp.eq.s32.totalorder %s28, 0
      %p102 = por %p100, %p101
      %p103 = scmp.ne.s32.totalorder %s89, %s90
      %p104 = scmp.eq.s32.totalorder %s29, 7
      %p105 = por %p103, %p104
      %p107 = scmp.ne.s32.totalorder %s90, %s106
      %p108 = scmp.eq.s32.totalorder %s29, 0
      %p109 = por %p107, %p108
      %s111 = sadd.s32 %s110, 1
      %p114 = scmp.eq.s32.totalorder %s23, 7
      %p115 = scmp.ne.s32.totalorder %s110, %s112
      %p116 = scmp.eq.s32.totalorder %s23, 0
      %p117 = por %p115, %p116
      %p118 = scmp.ne.s32.totalorder %s110, %s112
      %p119 = scmp.eq.s32.totalorder %s28, 7
      %p120 = por %p118, %p119
      %p121 = scmp.ne.s32.totalorder %s112, %s113
      %p122 = scmp.eq.s32.totalorder %s28, 0
      %p123 = por %p121, %p122
      %p124 = scmp.ne.s32.totalorder %s112, %s113
      %p125 = scmp.eq.s32.totalorder %s29, 7
      %p126 = por %p124, %p125
      %p128 = scmp.ne.s32.totalorder %s113, %s127
      %p129 = scmp.eq.s32.totalorder %s29, 0
      %p130 = por %p128, %p129
      %s132 = sadd.s32 %s131, 1
      %p135 = scmp.eq.s32.totalorder %s23, 7
      %p136 = scmp.ne.s32.totalorder %s131, %s133
      %p137 = scmp.eq.s32.totalorder %s23, 0
      %p138 = por %p136, %p137
      %p139 = scmp.ne.s32.totalorder %s131, %s133
      %p140 = scmp.eq.s32.totalorder %s28, 7
      %p141 = por %p139, %p140
      %p142 = scmp.ne.s32.totalorder %s133, %s134
      %p143 = scmp.eq.s32.totalorder %s28, 0
      %p144 = por %p142, %p143
      %p145 = scmp.ne.s32.totalorder %s133, %s134
      %p146 = scmp.eq.s32.totalorder %s29, 7
      %p147 = por %p145, %p146
      %p149 = scmp.ne.s32.totalorder %s134, %s148
      %p150 = scmp.eq.s32.totalorder %s29, 0
      %p151 = por %p149, %p150
      %s153 = sadd.s32 %s152, 1
      %p156 = scmp.eq.s32.totalorder %s23, 7
      %p157 = scmp.ne.s32.totalorder %s152, %s154
      %p158 = scmp.eq.s32.totalorder %s23, 0
      %p159 = por %p157, %p158
      %p160 = scmp.ne.s32.totalorder %s152, %s154
      %p161 = scmp.eq.s32.totalorder %s28, 7
      %p162 = por %p160, %p161
      %p163 = scmp.ne.s32.totalorder %s154, %s155
      %p164 = scmp.eq.s32.totalorder %s28, 0
      %p165 = por %p163, %p164
      %p166 = scmp.ne.s32.totalorder %s154, %s155
      %p167 = scmp.eq.s32.totalorder %s29, 7
      %p168 = por %p166, %p167
      %p170 = scmp.ne.s32.totalorder %s155, %s169
      %p171 = scmp.eq.s32.totalorder %s29, 0
      %p172 = por %p170, %p171
      %s174 = sadd.s32 %s173, 1
      %p177 = scmp.eq.s32.totalorder %s23, 7
      %p178 = scmp.ne.s32.totalorder %s173, %s175
      %p179 = scmp.eq.s32.totalorder %s23, 0
      %p180 = por %p178, %p179
      %p181 = scmp.ne.s32.totalorder %s173, %s175
      %p182 = scmp.eq.s32.totalorder %s28, 7
      %p183 = por %p181, %p182
      %p184 = scmp.ne.s32.totalorder %s175, %s176
      %p185 = scmp.eq.s32.totalorder %s28, 0
      %p186 = por %p184, %p185
      %p187 = scmp.ne.s32.totalorder %s175, %s176
      %p188 = scmp.eq.s32.totalorder %s29, 7
      %p189 = por %p187, %p188
      %p191 = scmp.ne.s32.totalorder %s176, %s190
      %p192 = scmp.eq.s32.totalorder %s29, 0
      %p193 = por %p191, %p192
      %s195 = sadd.s32 %s194, 1
      %p198 = scmp.eq.s32.totalorder %s23, 7
      %p199 = scmp.ne.s32.totalorder %s194, %s196
      %p200 = scmp.eq.s32.totalorder %s23, 0
      %p201 = por %p199, %p200
      %p202 = scmp.ne.s32.totalorder %s194, %s196
      %p203 = scmp.eq.s32.totalorder %s28, 7
      %p204 = por %p202, %p203
      %p205 = scmp.ne.s32.totalorder %s196, %s197
      %p206 = scmp.eq.s32.totalorder %s28, 0
      %p207 = por %p205, %p206
      %p208 = scmp.ne.s32.totalorder %s196, %s197
      %p209 = scmp.eq.s32.totalorder %s29, 7
      %p210 = por %p208, %p209
      %p212 = scmp.ne.s32.totalorder %s197, %s211
      %p213 = scmp.eq.s32.totalorder %s29, 0
      %p214 = por %p212, %p213
      %s215 = ssub.s32 %s30, %s49
      %s216 = ssub.s32 %s31, %s45
      %s217 = sor.u32 %s215, %s216
      %p218 = scmp.eq.s32.totalorder %s217, 0
      %s220 = sadd.s32 %s219, 1
      %s221 = scalar_select %p218, %s219, %s220
      %p224 = pneg %p218
      %p225 = scmp.eq.s32.totalorder %s23, 7
      %p226 = por %p224, %p225
      %p227 = scmp.ne.s32.totalorder %s219, %s222
      %p228 = scmp.eq.s32.totalorder %s23, 0
      %p229 = por %p227, %p228
      %p230 = scmp.ne.s32.totalorder %s219, %s222
      %p231 = scmp.eq.s32.totalorder %s28, 7
      %p232 = por %p230, %p231
      %p233 = scmp.ne.s32.totalorder %s222, %s223
      %p234 = scmp.eq.s32.totalorder %s28, 0
      %p235 = por %p233, %p234
      %p236 = scmp.ne.s32.totalorder %s222, %s223
      %p237 = scmp.eq.s32.totalorder %s29, 7
      %p238 = por %p236, %p237
      %p240 = scmp.ne.s32.totalorder %s223, %s239
      %p241 = scmp.eq.s32.totalorder %s29, 0
      %p242 = por %p240, %p241
      %p243 = scmp.le.s32.totalorder 1, %s23
      %p244 = scmp.lt.s32.totalorder %s23, 9
      %p245 = pnand %p243, %p244
      %p246 = pneg %p245
      // Predicated region
      $region9: #{tpu_custom_call.1} parent=5 // pred_check
        _
      $region10: #{tpu_custom_call.1} parent=5 // pred_check_branch
        %248 = sbr.rel (%p245) target = $region12
      $region11: #{tpu_custom_call.1} parent=5 // pred_region
        %s249 = ssub.s32 %s23, 1
        // Predicated region
        $region13: #{tpu_custom_call.1} parent=11 // pred_check
          %p250 = pneg %p123
        $region14: #{tpu_custom_call.1} parent=11 // pred_check_branch
          %252 = sbr.rel (%p250) target = $region16
        $region15: #{tpu_custom_call.1} parent=11 // pred_region
          _
        $region16: #{tpu_custom_call.1} parent=11 // pred_fallthru
          _
        // Predicated region
        $region17: #{tpu_custom_call.1} parent=11 // pred_check
          %p253 = pneg %p144
        $region18: #{tpu_custom_call.1} parent=11 // pred_check_branch
          %255 = sbr.rel (%p253) target = $region20
        $region19: #{tpu_custom_call.1} parent=11 // pred_region
          _
        $region20: #{tpu_custom_call.1} parent=11 // pred_fallthru
          _
        // Predicated region
        $region21: #{tpu_custom_call.1} parent=11 // pred_check
          %p256 = pneg %p165
        $region22: #{tpu_custom_call.1} parent=11 // pred_check_branch
          %258 = sbr.rel (%p256) target = $region24
        $region23: #{tpu_custom_call.1} parent=11 // pred_region
          _
        $region24: #{tpu_custom_call.1} parent=11 // pred_fallthru
          _
        // Predicated region
        $region25: #{tpu_custom_call.1} parent=11 // pred_check
          %p259 = pneg %p186
        $region26: #{tpu_custom_call.1} parent=11 // pred_check_branch
          %261 = sbr.rel (%p259) target = $region28
        $region27: #{tpu_custom_call.1} parent=11 // pred_region
          _
        $region28: #{tpu_custom_call.1} parent=11 // pred_fallthru
          _
        // Predicated region
        $region29: #{tpu_custom_call.1} parent=11 // pred_check
          %p262 = pneg %p207
        $region30: #{tpu_custom_call.1} parent=11 // pred_check_branch
          %264 = sbr.rel (%p262) target = $region32
        $region31: #{tpu_custom_call.1} parent=11 // pred_region
          _
        $region32: #{tpu_custom_call.1} parent=11 // pred_fallthru
          _
      $region12: #{tpu_custom_call.1} parent=5 // pred_fallthru
        _
      %p265 = scmp.lt.s32.totalorder %s23, 8
      // Predicated region
      $region33: #{tpu_custom_call.1} parent=5 // pred_check
        %p266 = pneg %p265
      $region34: #{tpu_custom_call.1} parent=5 // pred_check_branch
        %268 = sbr.rel (%p266) target = $region36
      $region35: #{tpu_custom_call.1} parent=5 // pred_region
        // Predicated region
        $region37: #{tpu_custom_call.1} parent=35 // pred_check
          %p269 = pneg %p64
        $region38: #{tpu_custom_call.1} parent=35 // pred_check_branch
          %271 = sbr.rel (%p269) target = $region40
        $region39: #{tpu_custom_call.1} parent=35 // pred_region
          %s272 = sand.u32 %s54, 1
          %s273 = scalar_lea.sflag [#allocation9], %s272
          %s274 = sand.u32 %s54, 1
          %s275 = smul.addr %s274, 16
          %s276 = scalar_lea.vmem [#allocation8], %s275
          %s278 = ssub.s32 256, 256
          %279 = vsyncadd %s273, %s278
          %s280 = smul.addr %s30, 4
          %s281 = sadd.s32 %s31, %s280
          %s282 = smul.addr %s281, 128
          %s283 = scalar_lea.hbm %s0, %s282
          %s284 = sshll.u32 %s276, 4
          %s285 = int_to_ptr.vmem [resolvable:$true] %s284
          %290 = dma.hbm_to_vmem [thread:$0]  %s283, 256, %s285, %s273, 256, 128, 8
        $region40: #{tpu_custom_call.1} parent=35 // pred_fallthru
          _
        // Predicated region
        $region41: #{tpu_custom_call.1} parent=35 // pred_check
          %p291 = pneg %p96
        $region42: #{tpu_custom_call.1} parent=35 // pred_check_branch
          %293 = sbr.rel (%p291) target = $region44
        $region43: #{tpu_custom_call.1} parent=35 // pred_region
          %s294 = sand.u32 %s86, 1
          %s295 = scalar_lea.sflag [#allocation12], %s294
          %s296 = sand.u32 %s86, 1
          %s297 = smul.addr %s296, 16
          %s298 = scalar_lea.vmem [#allocation11], %s297
          %p299 = scmp.eq.s32.totalorder %s31, 0
          %s300 = scalar_select %p299, %s32, 1
          %s302 = ssub.s32 256, 256
          %303 = vsyncadd %s295, %s302
          %s304 = smul.addr %s30, 4
          %s305 = sadd.s32 %s300, %s304
          %s306 = smul.addr %s305, 128
          %s307 = scalar_lea.hbm %s1, %s306
          %s308 = sshll.u32 %s298, 4
          %s309 = int_to_ptr.vmem [resolvable:$true] %s308
          %314 = dma.hbm_to_vmem [thread:$0]  %s307, 256, %s309, %s295, 256, 128, 8
        $region44: #{tpu_custom_call.1} parent=35 // pred_fallthru
          _
      $region36: #{tpu_custom_call.1} parent=5 // pred_fallthru
        _
      %p315 = scmp.le.s32.totalorder 1, %s23
      %p316 = scmp.lt.s32.totalorder %s23, 9
      %p317 = pnand %p315, %p316
      %p318 = pneg %p317
      // Predicated region
      $region45: #{tpu_custom_call.1} parent=5 // pred_check
        _
      $region46: #{tpu_custom_call.1} parent=5 // pred_check_branch
        %320 = sbr.rel (%p317) target = $region48
      $region47: #{tpu_custom_call.1} parent=5 // pred_region
        %s321 = ssub.s32 %s23, 1
        %s322 = sand.u32 %s57, 1
        %s323 = scalar_lea.sflag [#allocation9], %s322
        %s324 = sand.u32 %s57, 1
        %s325 = smul.addr %s324, 16
        %s326 = scalar_lea.vmem [#allocation8], %s325
        // Predicated region
        $region49: #{tpu_custom_call.1} parent=47 // pred_check
          %p327 = pneg %p70
        $region50: #{tpu_custom_call.1} parent=47 // pred_check_branch
          %329 = sbr.rel (%p327) target = $region52
        $region51: #{tpu_custom_call.1} parent=47 // pred_region
          %330 = dma.done %s323, 256
        $region52: #{tpu_custom_call.1} parent=47 // pred_fallthru
          _
        %s331 = sand.u32 %s89, 1
        %s332 = scalar_lea.sflag [#allocation12], %s331
        %s333 = sand.u32 %s89, 1
        %s334 = smul.addr %s333, 16
        %s335 = scalar_lea.vmem [#allocation11], %s334
        // Predicated region
        $region53: #{tpu_custom_call.1} parent=47 // pred_check
          %p336 = pneg %p102
        $region54: #{tpu_custom_call.1} parent=47 // pred_check_branch
          %338 = sbr.rel (%p336) target = $region56
        $region55: #{tpu_custom_call.1} parent=47 // pred_region
          %339 = dma.done %s332, 256
        $region56: #{tpu_custom_call.1} parent=47 // pred_fallthru
          _
        %s340 = sand.u32 %s57, 1
        %s341 = scalar_lea.sflag [#allocation9], %s340
        %s342 = sand.u32 %s57, 1
        %s343 = smul.addr %s342, 16
        %s344 = scalar_lea.vmem [#allocation8], %s343
        %p345 = pneg %p70
        %p346 = pneg %p67
        %s347 = sand.u32 %s89, 1
        %s348 = scalar_lea.sflag [#allocation12], %s347
        %s349 = sand.u32 %s89, 1
        %s350 = smul.addr %s349, 16
        %s351 = scalar_lea.vmem [#allocation11], %s350
        %p352 = pneg %p102
        %p353 = pneg %p99
        %p354 = pneg %p123
        %p355 = pneg %p120
        %p356 = pneg %p144
        %p357 = pneg %p141
        %p358 = pneg %p165
        %p359 = pneg %p162
        %p360 = pneg %p186
        %p361 = pneg %p183
        %p362 = pneg %p207
        %p363 = pneg %p204
        %p364 = pneg %p235
        %p365 = pneg %p232
        %s366 = sand.u32 %s222, 1
        %s367 = scalar_lea.sflag [#allocation10], %s366
        %s368 = sand.u32 %s222, 1
        %s369 = smul.addr %s368, 16
        %s370 = scalar_lea.vmem [#allocation13], %s369
        %p371 = scmp.eq.s32.totalorder %s34, 0
        %s372 = scalar_select %p371, %s35, 1
        %s374 = smul.u32 %s35, 128
        %p375 = scmp.eq.s32.totalorder %s34, 0
        // Predicated region
        $region57: #{tpu_custom_call.1} parent=47 // pred_check
          %p376 = pneg %p375
        $region58: #{tpu_custom_call.1} parent=47 // pred_check_branch
          %378 = sbr.rel (%p376) target = $region60
        $region59: #{tpu_custom_call.1} parent=47 // pred_region
          %v379 = vld [vmem:[%s335] sm:$0xff]
          %v380 = vld [vmem:[%s335 + $0x8] sm:$0xff]
          %v381 = vpack.c.bf16 %v380, %v379
          %v382 = vld [vmem:[%s4] sm:$0xf]
          %v383 = vld [vmem:[%s4 + $0x4] sm:$0xf]
          %v384 = vld [vmem:[%s4 + $0x8] sm:$0xf]
          %v385 = vld [vmem:[%s4 + $0xc] sm:$0xf]
          %v386 = vld [vmem:[%s5] sm:$0xff]
          %v387 = vld [vmem:[%s5 + $0x8] sm:$0xff]
          %v388 = vld [vmem:[%s5 + $0x10] sm:$0xff]
          %v389 = vld [vmem:[%s5 + $0x18] sm:$0xff]
          %391 = vset.pattern.permute.xlu0 0
          %392 = vperm.xlu0 %391, %v386
          %v393 = vpop.permute.xlu0 %392
          %396 = vset.pattern.permute.xlu0 0
          %397 = vperm.xlu0 %396, %v387
          %v398 = vpop.permute.xlu0 %397
          %401 = vset.pattern.permute.xlu0 0
          %402 = vperm.xlu0 %401, %v388
          %v403 = vpop.permute.xlu0 %402
          %406 = vset.pattern.permute.xlu0 0
          %407 = vperm.xlu0 %406, %v389
          %v408 = vpop.permute.xlu0 %407
          %v414 = vunpack.c.l.b16 %v382
          %v415 = vunpack.c.l.b16 %v383
          %v416 = vunpack.c.l.b16 %v384
          %v417 = vunpack.c.l.b16 %v385
          %v418 = vpack.c.b16 %v415, %v414
          %v419 = vpack.c.b16 %v417, %v416
          %vm420 = vcmask 130048
          %v422 = vsel %vm420, %v418, 0
          %v425 = vsel %vm420, %v419, 0
          %427 = vmatprep.subr.bf16.mxu0 0
          %428 = vmatpush1.bf16.msra.mxu0 %v381
          %429 = vmatprep.subr.bf16.mxu0 0
          %430 = vmatpush1.bf16.msra.mxu0 0
          %431 = vmatprep.subr.bf16.mxu0 0
          %432 = vmatpush1.bf16.msra.mxu0 0
          %433 = vmatprep.subr.bf16.mxu0 0
          %434 = vmatpush1.bf16.msra.mxu0 0
          %435 = vmatprep.subr.bf16.mxu0 0
          %436 = vmatpush1.bf16.msra.mxu0 0
          %437 = vmatprep.subr.bf16.mxu0 0
          %438 = vmatpush1.bf16.msra.mxu0 0
          %439 = vmatprep.subr.bf16.mxu0 0
          %440 = vmatpush1.bf16.msra.mxu0 0
          %441 = vmatprep.subr.bf16.mxu0 0
          %442 = vmatpush1.bf16.msra.mxu0 0
          %443 = vmatprep.subr.bf16.mxu0 0
          %444 = vmatpush1.bf16.msra.mxu0 0
          %445 = vmatprep.subr.bf16.mxu0 0
          %446 = vmatpush1.bf16.msra.mxu0 0
          %447 = vmatprep.subr.bf16.mxu0 0
          %448 = vmatpush1.bf16.msra.mxu0 0
          %449 = vmatprep.subr.bf16.mxu0 0
          %450 = vmatpush1.bf16.msra.mxu0 0
          %451 = vmatprep.subr.bf16.mxu0 0
          %452 = vmatpush1.bf16.msra.mxu0 0
          %453 = vmatprep.subr.bf16.mxu0 0
          %454 = vmatpush1.bf16.msra.mxu0 0
          %455 = vmatprep.subr.bf16.mxu0 0
          %456 = vmatpush1.bf16.msra.mxu0 0
          %457 = vmatprep.subr.bf16.mxu0 0
          %458 = vmatpush1.bf16.msra.mxu0 0
          %459 = vmatprep.mubr.bf16.mxu0 0
          %460 = vmatmul.mubr.bf16.gmra.mrb[0].mxu0 %v422
          %v461 = vpop.f32.mrb[0].mxu0
          %v462 = vadd.f32 %v393, %v461
          %v463 = vpop.f32.mrb[0].mxu0
          %v464 = vpop.f32.mrb[0].mxu0
          %v465 = vadd.f32 %v398, %v464
          %v466 = vpop.f32.mrb[0].mxu0
          %467 = vmatprep.mubr.bf16.mxu0 0
          %468 = vmatmul.mubr.bf16.gmra.mrb[0].mxu0 %v425
          %v469 = vpop.f32.mrb[0].mxu0
          %v470 = vadd.f32 %v403, %v469
          %v471 = vpop.f32.mrb[0].mxu0
          %v472 = vpop.f32.mrb[0].mxu0
          %v473 = vadd.f32 %v408, %v472
          %v474 = vpop.f32.mrb[0].mxu0
          %475 = vdwg.mxu0
          %v476 = vpack.c.bf16 %v465, %v462
          %v477 = vpack.c.bf16 %v473, %v470
          %s478 = sshra.s32 %s374, 7
          %s479 = sand.u32 %s374, 127
          %s480 = smul.addr %s478, 8
          %s481 = scalar_lea.vmem [#allocation2], %s480
          %482 = vst [vmem:[%s481] sm:$0xff] %v476
          %483 = vst [vmem:[%s481 + $0x10] sm:$0xff] %v477
        $region60: #{tpu_custom_call.1} parent=47 // pred_fallthru
          _
        %p484 = scmp.eq.s32.totalorder %s35, 0
        // Predicated region
        $region61: #{tpu_custom_call.1} parent=47 // pred_check
          %p485 = pneg %p484
        $region62: #{tpu_custom_call.1} parent=47 // pred_check_branch
          %487 = sbr.rel (%p485) target = $region64
        $region63: #{tpu_custom_call.1} parent=47 // pred_region
          %v488 = vld [vmem:[%s326] sm:$0xff]
          %v489 = vld [vmem:[%s326 + $0x8] sm:$0xff]
          %v490 = vpack.c.bf16 %v489, %v488
          %v491 = vld [vmem:[%s2] sm:$0xf]
          %v492 = vld [vmem:[%s2 + $0x4] sm:$0xf]
          %v493 = vld [vmem:[%s3] sm:$0xff]
          %v494 = vld [vmem:[%s3 + $0x8] sm:$0xff]
          %496 = vset.pattern.permute.xlu0 0
          %497 = vperm.xlu0 %496, %v493
          %v498 = vpop.permute.xlu0 %497
          %501 = vset.pattern.permute.xlu0 0
          %502 = vperm.xlu0 %501, %v494
          %v503 = vpop.permute.xlu0 %502
          %v507 = vunpack.c.l.b16 %v491
          %v508 = vunpack.c.l.b16 %v492
          %v509 = vpack.c.b16 %v508, %v507
          %vm510 = vcmask 130048
          %v512 = vsel %vm510, %v509, 0
          %514 = vmatprep.subr.bf16.mxu0 0
          %515 = vmatpush1.bf16.msra.mxu0 %v490
          %516 = vmatprep.subr.bf16.mxu0 0
          %517 = vmatpush1.bf16.msra.mxu0 0
          %518 = vmatprep.subr.bf16.mxu0 0
          %519 = vmatpush1.bf16.msra.mxu0 0
          %520 = vmatprep.subr.bf16.mxu0 0
          %521 = vmatpush1.bf16.msra.mxu0 0
          %522 = vmatprep.subr.bf16.mxu0 0
          %523 = vmatpush1.bf16.msra.mxu0 0
          %524 = vmatprep.subr.bf16.mxu0 0
          %525 = vmatpush1.bf16.msra.mxu0 0
          %526 = vmatprep.subr.bf16.mxu0 0
          %527 = vmatpush1.bf16.msra.mxu0 0
          %528 = vmatprep.subr.bf16.mxu0 0
          %529 = vmatpush1.bf16.msra.mxu0 0
          %530 = vmatprep.subr.bf16.mxu0 0
          %531 = vmatpush1.bf16.msra.mxu0 0
          %532 = vmatprep.subr.bf16.mxu0 0
          %533 = vmatpush1.bf16.msra.mxu0 0
          %534 = vmatprep.subr.bf16.mxu0 0
          %535 = vmatpush1.bf16.msra.mxu0 0
          %536 = vmatprep.subr.bf16.mxu0 0
          %537 = vmatpush1.bf16.msra.mxu0 0
          %538 = vmatprep.subr.bf16.mxu0 0
          %539 = vmatpush1.bf16.msra.mxu0 0
          %540 = vmatprep.subr.bf16.mxu0 0
          %541 = vmatpush1.bf16.msra.mxu0 0
          %542 = vmatprep.subr.bf16.mxu0 0
          %543 = vmatpush1.bf16.msra.mxu0 0
          %544 = vmatprep.subr.bf16.mxu0 0
          %545 = vmatpush1.bf16.msra.mxu0 0
          %546 = vmatprep.mubr.bf16.mxu0 0
          %547 = vmatmul.mubr.bf16.gmra.mrb[0].mxu0 %v512
          %v548 = vpop.f32.mrb[0].mxu0
          %v549 = vadd.f32 %v498, %v548
          %v550 = vpop.f32.mrb[0].mxu0
          %v551 = vpop.f32.mrb[0].mxu0
          %v552 = vadd.f32 %v503, %v551
          %v553 = vpop.f32.mrb[0].mxu0
          %554 = vdwg.mxu0
          %v555 = vpack.c.bf16 %v552, %v549
          %556 = vst [vmem:[#allocation3] sm:$0xff] %v555
          %557 = vst [vmem:[#allocation4] sm:$0x1] -inf
          %558 = vst [vmem:[#allocation5] sm:$0x1] 0.0
          %559 = vst [vmem:[#allocation6] sm:$0xff] 0.0
          %560 = vst [vmem:[#allocation6 + $0x8] sm:$0xff] 0.0
        $region64: #{tpu_custom_call.1} parent=47 // pred_fallthru
          _
        %s561 = sshra.s32 %s374, 7
        %s562 = sand.u32 %s374, 127
        %s563 = smul.addr %s561, 8
        %s564 = scalar_lea.vmem [#allocation2], %s563
        %v565 = vld [vmem:[%s564] sm:$0xff]
        %v566 = vld [vmem:[%s564 + $0x10] sm:$0xff]
        %v567 = vld [vmem:[#allocation3] sm:$0xff]
        %568 = vxpose.xlu0.c.b16.start [1/8] %v565, 128
        %569 = vxpose.xlu0.c.b16.cont [2/8] 0, 128
        %570 = vxpose.xlu0.c.b16.cont [3/8] 0, 128
        %571 = vxpose.xlu0.c.b16.cont [4/8] 0, 128
        %572 = vxpose.xlu0.c.b16.cont [5/8] 0, 128
        %573 = vxpose.xlu0.c.b16.cont [6/8] 0, 128
        %574 = vxpose.xlu0.c.b16.cont [7/8] 0, 128
        %575 = vxpose.xlu0.c.b16.end [8/8] 0, 128
        %v576 = vpop.trf.xlu0
        %v577 = vpop.trf.xlu0
        %v578 = vpop.trf.xlu0
        %v579 = vpop.trf.xlu0
        %v580 = vpop.trf.xlu0
        %v581 = vpop.trf.xlu0
        %v582 = vpop.trf.xlu0
        %v583 = vpop.trf.xlu0
        %vm584 = vcmask 130048
        %v586 = vsel %vm584, %v576, 0
        %v589 = vsel %vm584, %v577, 0
        %v592 = vsel %vm584, %v578, 0
        %v595 = vsel %vm584, %v579, 0
        %v598 = vsel %vm584, %v580, 0
        %v601 = vsel %vm584, %v581, 0
        %v604 = vsel %vm584, %v582, 0
        %v607 = vsel %vm584, %v583, 0
        %609 = vmatprep.subr.bf16.mxu0 0
        %610 = vmatpush1.bf16.msra.mxu0 %v567
        %611 = vmatprep.subr.bf16.mxu0 0
        %612 = vmatpush1.bf16.msra.mxu0 0
        %613 = vmatprep.subr.bf16.mxu0 0
        %614 = vmatpush1.bf16.msra.mxu0 0
        %615 = vmatprep.subr.bf16.mxu0 0
        %616 = vmatpush1.bf16.msra.mxu0 0
        %617 = vmatprep.subr.bf16.mxu0 0
        %618 = vmatpush1.bf16.msra.mxu0 0
        %619 = vmatprep.subr.bf16.mxu0 0
        %620 = vmatpush1.bf16.msra.mxu0 0
        %621 = vmatprep.subr.bf16.mxu0 0
        %622 = vmatpush1.bf16.msra.mxu0 0
        %623 = vmatprep.subr.bf16.mxu0 0
        %624 = vmatpush1.bf16.msra.mxu0 0
        %625 = vmatprep.subr.bf16.mxu0 0
        %626 = vmatpush1.bf16.msra.mxu0 0
        %627 = vmatprep.subr.bf16.mxu0 0
        %628 = vmatpush1.bf16.msra.mxu0 0
        %629 = vmatprep.subr.bf16.mxu0 0
        %630 = vmatpush1.bf16.msra.mxu0 0
        %631 = vmatprep.subr.bf16.mxu0 0
        %632 = vmatpush1.bf16.msra.mxu0 0
        %633 = vmatprep.subr.bf16.mxu0 0
        %634 = vmatpush1.bf16.msra.mxu0 0
        %635 = vmatprep.subr.bf16.mxu0 0
        %636 = vmatpush1.bf16.msra.mxu0 0
        %637 = vmatprep.subr.bf16.mxu0 0
        %638 = vmatpush1.bf16.msra.mxu0 0
        %639 = vmatprep.subr.bf16.mxu0 0
        %640 = vmatpush1.bf16.msra.mxu0 0
        %641 = vmatprep.mubr.bf16.mxu0 0
        %642 = vmatmul.mubr.bf16.gmra.mrb[0].mxu0 %v586
        %v643 = vpop.f32.mrb[0].mxu0
        %v644 = vadd.f32 0.0, %v643
        %v645 = vpop.f32.mrb[0].mxu0
        %v646 = vpop.f32.mrb[0].mxu0
        %v647 = vadd.f32 0.0, %v646
        %v648 = vpop.f32.mrb[0].mxu0
        %649 = vmatprep.mubr.bf16.mxu0 0
        %650 = vmatmul.mubr.bf16.gmra.mrb[0].mxu0 %v589
        %v651 = vpop.f32.mrb[0].mxu0
        %v652 = vadd.f32 0.0, %v651
        %v653 = vpop.f32.mrb[0].mxu0
        %v654 = vpop.f32.mrb[0].mxu0
        %v655 = vadd.f32 0.0, %v654
        %v656 = vpop.f32.mrb[0].mxu0
        %657 = vmatprep.mubr.bf16.mxu0 0
        %658 = vmatmul.mubr.bf16.gmra.mrb[0].mxu0 %v592
        %v659 = vpop.f32.mrb[0].mxu0
        %v660 = vadd.f32 0.0, %v659
        %v661 = vpop.f32.mrb[0].mxu0
        %v662 = vpop.f32.mrb[0].mxu0
        %v663 = vadd.f32 0.0, %v662
        %v664 = vpop.f32.mrb[0].mxu0
        %665 = vmatprep.mubr.bf16.mxu0 0
        %666 = vmatmul.mubr.bf16.gmra.mrb[0].mxu0 %v595
        %v667 = vpop.f32.mrb[0].mxu0
        %v668 = vadd.f32 0.0, %v667
        %v669 = vpop.f32.mrb[0].mxu0
        %v670 = vpop.f32.mrb[0].mxu0
        %v671 = vadd.f32 0.0, %v670
        %v672 = vpop.f32.mrb[0].mxu0
        %673 = vmatprep.mubr.bf16.mxu0 0
        %674 = vmatmul.mubr.bf16.gmra.mrb[0].mxu0 %v598
        %v675 = vpop.f32.mrb[0].mxu0
        %v676 = vadd.f32 0.0, %v675
        %v677 = vpop.f32.mrb[0].mxu0
        %v678 = vpop.f32.mrb[0].mxu0
        %v679 = vadd.f32 0.0, %v678
        %v680 = vpop.f32.mrb[0].mxu0
        %681 = vmatprep.mubr.bf16.mxu0 0
        %682 = vmatmul.mubr.bf16.gmra.mrb[0].mxu0 %v601
        %v683 = vpop.f32.mrb[0].mxu0
        %v684 = vadd.f32 0.0, %v683
        %v685 = vpop.f32.mrb[0].mxu0
        %v686 = vpop.f32.mrb[0].mxu0
        %v687 = vadd.f32 0.0, %v686
        %v688 = vpop.f32.mrb[0].mxu0
        %689 = vmatprep.mubr.bf16.mxu0 0
        %690 = vmatmul.mubr.bf16.gmra.mrb[0].mxu0 %v604
        %v691 = vpop.f32.mrb[0].mxu0
        %v692 = vadd.f32 0.0, %v691
        %v693 = vpop.f32.mrb[0].mxu0
        %v694 = vpop.f32.mrb[0].mxu0
        %v695 = vadd.f32 0.0, %v694
        %v696 = vpop.f32.mrb[0].mxu0
        %697 = vmatprep.mubr.bf16.mxu0 0
        %698 = vmatmul.mubr.bf16.gmra.mrb[0].mxu0 %v607
        %v699 = vpop.f32.mrb[0].mxu0
        %v700 = vadd.f32 0.0, %v699
        %v701 = vpop.f32.mrb[0].mxu0
        %v702 = vpop.f32.mrb[0].mxu0
        %v703 = vadd.f32 0.0, %v702
        %v704 = vpop.f32.mrb[0].mxu0
        %705 = vdwg.mxu0
        %v706 = vld [vmem:[#allocation4] sm:$0x1]
        %v707 = vmax.f32 %v644, %v660
        %v708 = vmax.f32 %v647, %v663
        %v709 = vmax.f32 %v652, %v668
        %v710 = vmax.f32 %v655, %v671
        %v711 = vmax.f32 %v707, %v676
        %v712 = vmax.f32 %v708, %v679
        %v713 = vmax.f32 %v709, %v684
        %v714 = vmax.f32 %v710, %v687
        %v715 = vmax.f32 %v711, %v692
        %v716 = vmax.f32 %v712, %v695
        %v717 = vmax.f32 %v713, %v700
        %v718 = vmax.f32 %v714, %v703
        %v719 = vmax.f32 %v715, %v716
        %v720 = vmax.f32 %v717, %v718
        %v721 = vmax.f32 %v719, %v720
        %v722 = vrot.slane %v721, 4
        %v723 = vmax.f32 %v721, %v722
        %v724 = vrot.slane %v723, 2
        %v725 = vmax.f32 %v723, %v724
        %v726 = vrot.slane %v725, 1
        %v727 = vmax.f32 %v725, %v726
        %v728 = vmax.f32 %v706, %v727
        %v729 = vsub.f32 %v706, %v728
        %v730 = vmul.f32 %v729, 1.442695
        %v731 = vpow.pop %v730
        %v733 = vlaneseq
        %v734 = vshrl.u32 %v733, 7
        %v735 = vsub.s32 0, %v734
        %v736 = vrot.slane %v728, %v735
        %v738 = vsub.f32 %v644, %v736
        %v739 = vsub.f32 %v647, %v736
        %v740 = vsub.f32 %v652, %v736
        %v741 = vsub.f32 %v655, %v736
        %v742 = vsub.f32 %v660, %v736
        %v743 = vsub.f32 %v663, %v736
        %v744 = vsub.f32 %v668, %v736
        %v745 = vsub.f32 %v671, %v736
        %v746 = vsub.f32 %v676, %v736
        %v747 = vsub.f32 %v679, %v736
        %v748 = vsub.f32 %v684, %v736
        %v749 = vsub.f32 %v687, %v736
        %v750 = vsub.f32 %v692, %v736
        %v751 = vsub.f32 %v695, %v736
        %v752 = vsub.f32 %v700, %v736
        %v753 = vsub.f32 %v703, %v736
        %v754 = vmul.f32 %v738, 1.442695
        %v755 = vpow.pop %v754
        %v756 = vmul.f32 %v739, 1.442695
        %v757 = vpow.pop %v756
        %v758 = vmul.f32 %v740, 1.442695
        %v759 = vpow.pop %v758
        %v760 = vmul.f32 %v741, 1.442695
        %v761 = vpow.pop %v760
        %v762 = vmul.f32 %v742, 1.442695
        %v763 = vpow.pop %v762
        %v764 = vmul.f32 %v743, 1.442695
        %v765 = vpow.pop %v764
        %v766 = vmul.f32 %v744, 1.442695
        %v767 = vpow.pop %v766
        %v768 = vmul.f32 %v745, 1.442695
        %v769 = vpow.pop %v768
        %v770 = vmul.f32 %v746, 1.442695
        %v771 = vpow.pop %v770
        %v772 = vmul.f32 %v747, 1.442695
        %v773 = vpow.pop %v772
        %v774 = vmul.f32 %v748, 1.442695
        %v775 = vpow.pop %v774
        %v776 = vmul.f32 %v749, 1.442695
        %v777 = vpow.pop %v776
        %v778 = vmul.f32 %v750, 1.442695
        %v779 = vpow.pop %v778
        %v780 = vmul.f32 %v751, 1.442695
        %v781 = vpow.pop %v780
        %v782 = vmul.f32 %v752, 1.442695
        %v783 = vpow.pop %v782
        %v784 = vmul.f32 %v753, 1.442695
        %v785 = vpow.pop %v784
        %v786 = vld [vmem:[#allocation5] sm:$0x1]
        %v787 = vmul.f32 %v731, %v786
        %v788 = vadd.f32 %v755, %v757
        %v789 = vadd.f32 %v788, %v759
        %v790 = vadd.f32 %v789, %v761
        %v791 = vadd.f32 %v790, %v763
        %v792 = vadd.f32 %v791, %v765
        %v793 = vadd.f32 %v792, %v767
        %v794 = vadd.f32 %v793, %v769
        %v795 = vadd.f32 %v794, %v771
        %v796 = vadd.f32 %v795, %v773
        %v797 = vadd.f32 %v796, %v775
        %v798 = vadd.f32 %v797, %v777
        %v799 = vadd.f32 %v798, %v779
        %v800 = vadd.f32 %v799, %v781
        %v801 = vadd.f32 %v800, %v783
        %v802 = vadd.f32 %v801, %v785
        %v803 = vrot.slane %v802, 4
        %v804 = vadd.f32 %v802, %v803
        %v805 = vrot.slane %v804, 2
        %v806 = vadd.f32 %v804, %v805
        %v807 = vrot.slane %v806, 1
        %v808 = vadd.f32 %v806, %v807
        %v809 = vadd.f32 %v787, %v808
        %810 = vst [vmem:[#allocation5] sm:$0x1] %v809
        %811 = vst [vmem:[#allocation4] sm:$0x1] %v728
        %v812 = vpack.c.bf16 %v757, %v755
        %v813 = vpack.c.bf16 %v761, %v759
        %v814 = vpack.c.bf16 %v765, %v763
        %v815 = vpack.c.bf16 %v769, %v767
        %v816 = vpack.c.bf16 %v773, %v771
        %v817 = vpack.c.bf16 %v777, %v775
        %v818 = vpack.c.bf16 %v781, %v779
        %v819 = vpack.c.bf16 %v785, %v783
        %820 = vmatprep.subr.bf16.mxu0 0
        %821 = vmatpush1.bf16.msra.mxu0 %v812
        %822 = vmatprep.subr.bf16.mxu0 0
        %823 = vmatpush1.bf16.msra.mxu0 %v813
        %824 = vmatprep.subr.bf16.mxu0 0
        %825 = vmatpush1.bf16.msra.mxu0 %v814
        %826 = vmatprep.subr.bf16.mxu0 0
        %827 = vmatpush1.bf16.msra.mxu0 %v815
        %828 = vmatprep.subr.bf16.mxu0 0
        %829 = vmatpush1.bf16.msra.mxu0 %v816
        %830 = vmatprep.subr.bf16.mxu0 0
        %831 = vmatpush1.bf16.msra.mxu0 %v817
        %832 = vmatprep.subr.bf16.mxu0 0
        %833 = vmatpush1.bf16.msra.mxu0 %v818
        %834 = vmatprep.subr.bf16.mxu0 0
        %835 = vmatpush1.bf16.msra.mxu0 %v819
        %836 = vmatprep.subr.bf16.mxu0 0
        %837 = vmatpush1.bf16.msra.mxu0 0
        %838 = vmatprep.subr.bf16.mxu0 0
        %839 = vmatpush1.bf16.msra.mxu0 0
        %840 = vmatprep.subr.bf16.mxu0 0
        %841 = vmatpush1.bf16.msra.mxu0 0
        %842 = vmatprep.subr.bf16.mxu0 0
        %843 = vmatpush1.bf16.msra.mxu0 0
        %844 = vmatprep.subr.bf16.mxu0 0
        %845 = vmatpush1.bf16.msra.mxu0 0
        %846 = vmatprep.subr.bf16.mxu0 0
        %847 = vmatpush1.bf16.msra.mxu0 0
        %848 = vmatprep.subr.bf16.mxu0 0
        %849 = vmatpush1.bf16.msra.mxu0 0
        %850 = vmatprep.subr.bf16.mxu0 0
        %851 = vmatpush1.bf16.msra.mxu0 0
        %852 = vmatprep.mubr.bf16.mxu0 0
        %853 = vmatmul.mubr.bf16.gmra.mrb[0].mxu0 %v566
        %v854 = vpop.f32.mrb[0].mxu0
        %v855 = vadd.f32 0.0, %v854
        %v856 = vpop.f32.mrb[0].mxu0
        %v857 = vpop.f32.mrb[0].mxu0
        %v858 = vadd.f32 0.0, %v857
        %v859 = vpop.f32.mrb[0].mxu0
        %860 = vdwg.mxu0
        %v861 = vld [vmem:[#allocation6] sm:$0xff]
        %v862 = vld [vmem:[#allocation6 + $0x8] sm:$0xff]
        %v864 = vlaneseq
        %v865 = vshrl.u32 %v864, 7
        %v866 = vsub.s32 0, %v865
        %v867 = vrot.slane %v731, %v866
        %v869 = vmul.f32 %v867, %v861
        %v870 = vmul.f32 %v867, %v862
        %v871 = vadd.f32 %v869, %v855
        %v872 = vadd.f32 %v870, %v858
        %873 = vst [vmem:[#allocation6] sm:$0xff] %v871
        %874 = vst [vmem:[#allocation6 + $0x8] sm:$0xff] %v872
        %p875 = scmp.eq.s32.totalorder %s35, 1
        // Predicated region
        $region65: #{tpu_custom_call.1} parent=47 // pred_check
          %p876 = pneg %p875
        $region66: #{tpu_custom_call.1} parent=47 // pred_check_branch
          %878 = sbr.rel (%p876) target = $region68
        $region67: #{tpu_custom_call.1} parent=47 // pred_region
          %v879 = vld [vmem:[#allocation5] sm:$0x1]
          %v880 = vrcp.pop %v879
          %v881 = vld [vmem:[%s326] sm:$0xff]
          %v882 = vld [vmem:[%s326 + $0x8] sm:$0xff]
          %s883 = sld [smem:[#allocation7]]
          %v884 = vld [vmem:[#allocation6] sm:$0xff]
          %v885 = vld [vmem:[#allocation6 + $0x8] sm:$0xff]
          %v886 = vstv %s883
          %v887 = vmul.f32 %v886, %v884
          %v888 = vmul.f32 %v886, %v885
          %v890 = vlaneseq
          %v891 = vshrl.u32 %v890, 7
          %v892 = vsub.s32 0, %v891
          %v893 = vrot.slane %v880, %v892
          %v895 = vmul.f32 %v887, %v893
          %v896 = vmul.f32 %v888, %v893
          %v897 = vadd.f32 %v895, %v881
          %v898 = vadd.f32 %v896, %v882
          %899 = vst [vmem:[%s370] sm:$0xff] %v897
          %900 = vst [vmem:[%s370 + $0x8] sm:$0xff] %v898
        $region68: #{tpu_custom_call.1} parent=47 // pred_fallthru
          _
        %s901 = sand.u32 %s222, 1
        %s902 = scalar_lea.sflag [#allocation10], %s901
        %s903 = sand.u32 %s222, 1
        %s904 = smul.addr %s903, 16
        %s905 = scalar_lea.vmem [#allocation13], %s904
        // Predicated region
        $region69: #{tpu_custom_call.1} parent=47 // pred_check
          %p906 = pneg %p232
        $region70: #{tpu_custom_call.1} parent=47 // pred_check_branch
          %908 = sbr.rel (%p906) target = $region72
        $region71: #{tpu_custom_call.1} parent=47 // pred_region
          %s910 = ssub.s32 256, 256
          %911 = vsyncadd %s902, %s910
          %s912 = smul.addr %s33, 4
          %s913 = sadd.s32 %s34, %s912
          %s914 = smul.addr %s913, 128
          %s915 = scalar_lea.hbm %s7, %s914
          %s916 = sshll.u32 %s905, 4
          %s917 = int_to_ptr.vmem [resolvable:$true] %s916
          %922 = dma.vmem_to_hbm [thread:$0]  %s917, 256, %s915, %s902, 128, 256, 8
        $region72: #{tpu_custom_call.1} parent=47 // pred_fallthru
          _
      $region48: #{tpu_custom_call.1} parent=5 // pred_fallthru
        _
      %p923 = scmp.le.s32.totalorder 2, %s23
      // Predicated region
      $region73: #{tpu_custom_call.1} parent=5 // pred_check
        %p924 = pneg %p923
      $region74: #{tpu_custom_call.1} parent=5 // pred_check_branch
        %926 = sbr.rel (%p924) target = $region76
      $region75: #{tpu_custom_call.1} parent=5 // pred_region
        %s927 = ssub.s32 %s23, 2
        // Predicated region
        $region77: #{tpu_custom_call.1} parent=75 // pred_check
          %p928 = pneg %p238
        $region78: #{tpu_custom_call.1} parent=75 // pred_check_branch
          %930 = sbr.rel (%p928) target = $region80
        $region79: #{tpu_custom_call.1} parent=75 // pred_region
          %s931 = sand.u32 %s223, 1
          %s932 = scalar_lea.sflag [#allocation10], %s931
          %s933 = sand.u32 %s223, 1
          %s934 = smul.addr %s933, 16
          %s935 = scalar_lea.vmem [#allocation13], %s934
          %936 = dma.done %s932, 256
        $region80: #{tpu_custom_call.1} parent=75 // pred_fallthru
          _
      $region76: #{tpu_custom_call.1} parent=5 // pred_fallthru
        _
    $region6: #{tpu_custom_call.1} parent=1 // loop_footer
      %s27 = sadd.s32 1, %s23
    $region7: #{tpu_custom_call.1} parent=1 // loop_footer_branch
      %22 = sbr.rel target = $region3
    $region8: #{tpu_custom_call.1} parent=1 // loop_exit
      _
    %937 = vsyncpa [#allocation9], 1
    %s938 = scalar_lea.sflag [#allocation9], 1
    %939 = vsyncpa %s938, 1
    %940 = vsyncpa [#allocation12], 1
    %s941 = scalar_lea.sflag [#allocation12], 1
    %942 = vsyncpa %s941, 1
    %943 = vsyncpa [#allocation10], 1
    %s944 = scalar_lea.sflag [#allocation10], 1
    %945 = vsyncpa %s944, 1

</llo_original>
